<compile_context>
chip_gen: v7x
topology: tpu7x:2x2x1
jax: 0.10.0
libtpu: 0.0.40
codegen_flags: <defaults>
</compile_context>

<pallas_src>
import math
from functools import partial

import jax
import jax.numpy as jnp
from jax.experimental import pallas as pl
from jax.experimental.pallas import tpu as pltpu

BN_EPS = 1e-5
LEAKY_SLOPE = 0.2
LANE = 128  # each packed (1, D) vector segment is padded to a multiple of the lane width


def _mlp_kernel(dim_list, vec_offsets, *refs):
    """refs = [x_ref, w_ref_0, ..., w_ref_{L-1}, vec_ref, o_ref]

    w_ref_i : (D_in_i, D_out_i) bf16 (pre-transposed nn.Linear weight).
    vec_ref : (1, P) f32 packed small vectors [gamma_0|beta_0|...|gamma_{H-1}|beta_{H-1}|b_last],
              each segment lane-aligned; vec_offsets gives the static start of each segment.
    """
    n_layers = len(dim_list) - 1
    n_hidden = n_layers - 1

    x_ref = refs[0]
    w_refs = refs[1:1 + n_layers]
    vec_ref = refs[1 + n_layers]
    o_ref = refs[-1]

    h = x_ref[...].astype(jnp.float32)

    for i in range(n_hidden):
        d_out = dim_list[i + 1]
        # Linear (hidden bias dropped: cancels exactly under BN mean subtraction).
        z = jnp.dot(h.astype(jnp.bfloat16), w_refs[i][...],
                    preferred_element_type=jnp.float32)
        # BatchNorm1d, training-mode batch statistics (biased variance), folded affine.
        g_off = vec_offsets[2 * i]
        b_off = vec_offsets[2 * i + 1]
        gamma = vec_ref[0:1, g_off:g_off + d_out]
        beta = vec_ref[0:1, b_off:b_off + d_out]
        mean = jnp.mean(z, axis=0, keepdims=True)
        var = jnp.mean(z * z, axis=0, keepdims=True) - mean * mean
        scale = jax.lax.rsqrt(var + BN_EPS) * gamma
        shift = beta - mean * scale
        h = z * scale + shift
        # LeakyReLU(0.2)
        h = jnp.maximum(h, LEAKY_SLOPE * h)

    # Final Linear (bias kept; no norm / activation since output_activation=None).
    d_out = dim_list[-1]
    b_off = vec_offsets[-1]
    b_last = vec_ref[0:1, b_off:b_off + d_out]
    z = jnp.dot(h.astype(jnp.bfloat16), w_refs[-1][...],
                preferred_element_type=jnp.float32) + b_last
    o_ref[...] = z.astype(o_ref.dtype)


def init_mlp_params(key, dim_list):
    """PyTorch-like init: nn.Linear default (kaiming_uniform_(a=sqrt(5)) -> U(-1/sqrt(fan_in), ..)
    for W and b), BatchNorm1d default gamma=1, beta=0.  Returns a list of per-layer dicts in
    the PyTorch (out, in) weight layout."""
    params = []
    n_layers = len(dim_list) - 1
    for i in range(n_layers):
        d_in, d_out = dim_list[i], dim_list[i + 1]
        key, kw, kb = jax.random.split(key, 3)
        bound = 1.0 / math.sqrt(d_in)
        layer = {
            "w": jax.random.uniform(kw, (d_out, d_in), jnp.float32, -bound, bound),
            "b": jax.random.uniform(kb, (d_out,), jnp.float32, -bound, bound),
        }
        if i < n_layers - 1:
            layer["gamma"] = jnp.ones((d_out,), jnp.float32)
            layer["beta"] = jnp.zeros((d_out,), jnp.float32)
        params.append(layer)
    return params


def pack_params(params, dim_list):
    """Transpose weights to (D_in, D_out) bf16, drop hidden biases (exact under BN), and pack
    all tiny vectors (gamma/beta per hidden layer + final bias) into one lane-aligned (1, P)
    f32 array.  Returns (weights, packed_vec, static lane offsets)."""
    n_layers = len(dim_list) - 1
    weights = [params[i]["w"].T.astype(jnp.bfloat16) for i in range(n_layers)]

    segs, offsets, off = [], [], 0

    def add(v):
        nonlocal off
        d = v.shape[0]
        padded = d + ((-d) % LANE)
        segs.append(jnp.pad(v.astype(jnp.float32), (0, padded - d)))
        offsets.append(off)
        off += padded

    for i in range(n_layers - 1):
        add(params[i]["gamma"])
        add(params[i]["beta"])
    add(params[n_layers - 1]["b"])

    vec = jnp.concatenate(segs)[None, :]
    return weights, vec, tuple(offsets)


def mlp_forward(x, params, dim_list):
    n, d_in = x.shape
    assert d_in == dim_list[0]
    d_out = dim_list[-1]

    weights, vec, offsets = pack_params(params, dim_list)
    kernel = partial(_mlp_kernel, tuple(dim_list), offsets)
    num_inputs = 1 + len(weights) + 1

    # Whole batch resident in a single VMEM block -> BN batch statistics stay exact.
    # TODO(synk): two-pass grid-over-N variant for batches too large for one VMEM block.
    return pl.pallas_call(
        kernel,
        out_shape=jax.ShapeDtypeStruct((n, d_out), jnp.float32),
        in_specs=[pl.BlockSpec(memory_space=pltpu.MemorySpace.VMEM)] * num_inputs,
        out_specs=pl.BlockSpec(memory_space=pltpu.MemorySpace.VMEM),
    )(x, *weights, vec)


def mlp_reference(x, params, dim_list, matmul_dtype=jnp.float32):
    """Pure-JAX reference following the PyTorch module exactly (hidden biases included,
    two-pass variance).  matmul_dtype=bfloat16 mimics the kernel's MXU numerics."""
    n_layers = len(dim_list) - 1
    h = x.astype(jnp.float32)

    def mm(a, w):
        if matmul_dtype == jnp.bfloat16:
            return jnp.dot(a.astype(jnp.bfloat16), w.T.astype(jnp.bfloat16),
                           preferred_element_type=jnp.float32)
        return a @ w.T

    for i in range(n_layers - 1):
        z = mm(h, params[i]["w"]) + params[i]["b"]
        mean = jnp.mean(z, axis=0, keepdims=True)
        var = jnp.mean((z - mean) ** 2, axis=0, keepdims=True)
        z = (z - mean) / jnp.sqrt(var + BN_EPS) * params[i]["gamma"] + params[i]["beta"]
        h = jnp.where(z > 0, z, LEAKY_SLOPE * z)
    return mm(h, params[-1]["w"]) + params[-1]["b"]


if __name__ == "__main__":
    dim_list = [32, 64, 64, 16]   # MLPModel(dim_list) with BN + leaky_relu defaults
    batch = 8

    key = jax.random.PRNGKey(0)
    key, kx = jax.random.split(key)
    x = jax.random.normal(kx, (batch, dim_list[0]), jnp.float32)

    params = init_mlp_params(key, dim_list)

    out = jax.block_until_ready(mlp_forward(x, params, dim_list))
    assert out.shape == (batch, dim_list[-1])

    # Tight check against a reference with matching (bf16 MXU) matmul numerics.
    ref_bf16 = mlp_reference(x, params, dim_list, matmul_dtype=jnp.bfloat16)
    assert jnp.allclose(out, ref_bf16, atol=1e-2, rtol=1e-2), "mismatch vs bf16-matmul reference"

    # Looser check against the full-f32 PyTorch-semantics reference (bf16 matmul rounding only).
    ref_f32 = mlp_reference(x, params, dim_list, matmul_dtype=jnp.float32)
    assert jnp.allclose(out, ref_f32, atol=5e-2, rtol=5e-2), "mismatch vs f32 reference"

    print("KERNEL_OK")
</pallas_src>

<mosaic_0001>
module attributes {stable_mosaic.version = 11 : i64} {
  func.func @_mlp_kernel(%arg0: memref<8x32xf32, #tpu.memory_space<vmem>>, %arg1: memref<32x64xbf16, #tpu.memory_space<vmem>>, %arg2: memref<64x64xbf16, #tpu.memory_space<vmem>>, %arg3: memref<64x16xbf16, #tpu.memory_space<vmem>>, %arg4: memref<1x640xf32, #tpu.memory_space<vmem>>, %arg5: memref<8x16xf32, #tpu.memory_space<vmem>>) attributes {dimension_semantics = [], scalar_prefetch = 0 : i64, scratch_operands = 0 : i64, tpu.core_type = #tpu.core_type<tc>} {
    %c0 = arith.constant 0 : index
    %c0_0 = arith.constant 0 : index
    %0 = vector.load %arg0[%c0, %c0_0] : memref<8x32xf32, #tpu.memory_space<vmem>>, vector<8x32xf32>
    %1 = arith.truncf %0 : vector<8x32xf32> to vector<8x32xbf16>
    %c0_1 = arith.constant 0 : index
    %c0_2 = arith.constant 0 : index
    %2 = vector.load %arg1[%c0_1, %c0_2] : memref<32x64xbf16, #tpu.memory_space<vmem>>, vector<32x64xbf16>
    %cst = arith.constant dense<0.000000e+00> : vector<8x64xf32>
    %3 = tpu.matmul %1, %2, %cst {dimension_numbers = #tpu.dot_dimension_numbers<[1], [0], [0], [1], [0, 0, 1, 1], [], []>} : vector<8x32xbf16>, vector<32x64xbf16>, vector<8x64xf32> -> vector<8x64xf32>
    %c0_3 = arith.constant 0 : index
    %c0_4 = arith.constant 0 : index
    %4 = vector.load %arg4[%c0_3, %c0_4] : memref<1x640xf32, #tpu.memory_space<vmem>>, vector<1x64xf32>
    %c0_5 = arith.constant 0 : index
    %c128 = arith.constant 128 : index
    %5 = vector.load %arg4[%c0_5, %c128] : memref<1x640xf32, #tpu.memory_space<vmem>>, vector<1x64xf32>
    %cst_6 = arith.constant dense<0.000000e+00> : vector<64xf32>
    %6 = vector.multi_reduction <add>, %3, %cst_6 [0] : vector<8x64xf32> to vector<64xf32>
    %7 = vector.shape_cast %6 : vector<64xf32> to vector<1x64xf32>
    %cst_7 = arith.constant 8.000000e+00 : f32
    %8 = vector.broadcast %cst_7 : f32 to vector<1x64xf32>
    %9 = arith.divf %7, %8 : vector<1x64xf32>
    %10 = arith.mulf %3, %3 : vector<8x64xf32>
    %cst_8 = arith.constant dense<0.000000e+00> : vector<64xf32>
    %11 = vector.multi_reduction <add>, %10, %cst_8 [0] : vector<8x64xf32> to vector<64xf32>
    %12 = vector.shape_cast %11 : vector<64xf32> to vector<1x64xf32>
    %cst_9 = arith.constant 8.000000e+00 : f32
    %13 = vector.broadcast %cst_9 : f32 to vector<1x64xf32>
    %14 = arith.divf %12, %13 : vector<1x64xf32>
    %15 = arith.mulf %9, %9 : vector<1x64xf32>
    %16 = arith.subf %14, %15 : vector<1x64xf32>
    %cst_10 = arith.constant 9.99999974E-6 : f32
    %17 = vector.broadcast %cst_10 : f32 to vector<1x64xf32>
    %18 = arith.addf %16, %17 : vector<1x64xf32>
    %19 = math.rsqrt %18 : vector<1x64xf32>
    %20 = arith.mulf %19, %4 : vector<1x64xf32>
    %21 = arith.mulf %9, %20 : vector<1x64xf32>
    %22 = arith.subf %5, %21 : vector<1x64xf32>
    %23 = vector.broadcast %20 : vector<1x64xf32> to vector<8x64xf32>
    %24 = arith.mulf %3, %23 : vector<8x64xf32>
    %25 = vector.broadcast %22 : vector<1x64xf32> to vector<8x64xf32>
    %26 = arith.addf %24, %25 : vector<8x64xf32>
    %cst_11 = arith.constant 2.000000e-01 : f32
    %27 = vector.broadcast %cst_11 : f32 to vector<8x64xf32>
    %28 = arith.mulf %27, %26 : vector<8x64xf32>
    %29 = arith.maximumf %26, %28 : vector<8x64xf32>
    %30 = arith.truncf %29 : vector<8x64xf32> to vector<8x64xbf16>
    %c0_12 = arith.constant 0 : index
    %c0_13 = arith.constant 0 : index
    %31 = vector.load %arg2[%c0_12, %c0_13] : memref<64x64xbf16, #tpu.memory_space<vmem>>, vector<64x64xbf16>
    %cst_14 = arith.constant dense<0.000000e+00> : vector<8x64xf32>
    %32 = tpu.matmul %30, %31, %cst_14 {dimension_numbers = #tpu.dot_dimension_numbers<[1], [0], [0], [1], [0, 0, 1, 1], [], []>} : vector<8x64xbf16>, vector<64x64xbf16>, vector<8x64xf32> -> vector<8x64xf32>
    %c0_15 = arith.constant 0 : index
    %c256 = arith.constant 256 : index
    %33 = vector.load %arg4[%c0_15, %c256] : memref<1x640xf32, #tpu.memory_space<vmem>>, vector<1x64xf32>
    %c0_16 = arith.constant 0 : index
    %c384 = arith.constant 384 : index
    %34 = vector.load %arg4[%c0_16, %c384] : memref<1x640xf32, #tpu.memory_space<vmem>>, vector<1x64xf32>
    %cst_17 = arith.constant dense<0.000000e+00> : vector<64xf32>
    %35 = vector.multi_reduction <add>, %32, %cst_17 [0] : vector<8x64xf32> to vector<64xf32>
    %36 = vector.shape_cast %35 : vector<64xf32> to vector<1x64xf32>
    %cst_18 = arith.constant 8.000000e+00 : f32
    %37 = vector.broadcast %cst_18 : f32 to vector<1x64xf32>
    %38 = arith.divf %36, %37 : vector<1x64xf32>
    %39 = arith.mulf %32, %32 : vector<8x64xf32>
    %cst_19 = arith.constant dense<0.000000e+00> : vector<64xf32>
    %40 = vector.multi_reduction <add>, %39, %cst_19 [0] : vector<8x64xf32> to vector<64xf32>
    %41 = vector.shape_cast %40 : vector<64xf32> to vector<1x64xf32>
    %cst_20 = arith.constant 8.000000e+00 : f32
    %42 = vector.broadcast %cst_20 : f32 to vector<1x64xf32>
    %43 = arith.divf %41, %42 : vector<1x64xf32>
    %44 = arith.mulf %38, %38 : vector<1x64xf32>
    %45 = arith.subf %43, %44 : vector<1x64xf32>
    %cst_21 = arith.constant 9.99999974E-6 : f32
    %46 = vector.broadcast %cst_21 : f32 to vector<1x64xf32>
    %47 = arith.addf %45, %46 : vector<1x64xf32>
    %48 = math.rsqrt %47 : vector<1x64xf32>
    %49 = arith.mulf %48, %33 : vector<1x64xf32>
    %50 = arith.mulf %38, %49 : vector<1x64xf32>
    %51 = arith.subf %34, %50 : vector<1x64xf32>
    %52 = vector.broadcast %49 : vector<1x64xf32> to vector<8x64xf32>
    %53 = arith.mulf %32, %52 : vector<8x64xf32>
    %54 = vector.broadcast %51 : vector<1x64xf32> to vector<8x64xf32>
    %55 = arith.addf %53, %54 : vector<8x64xf32>
    %cst_22 = arith.constant 2.000000e-01 : f32
    %56 = vector.broadcast %cst_22 : f32 to vector<8x64xf32>
    %57 = arith.mulf %56, %55 : vector<8x64xf32>
    %58 = arith.maximumf %55, %57 : vector<8x64xf32>
    %c0_23 = arith.constant 0 : index
    %c512 = arith.constant 512 : index
    %59 = vector.load %arg4[%c0_23, %c512] : memref<1x640xf32, #tpu.memory_space<vmem>>, vector<1x16xf32>
    %60 = arith.truncf %58 : vector<8x64xf32> to vector<8x64xbf16>
    %c0_24 = arith.constant 0 : index
    %c0_25 = arith.constant 0 : index
    %61 = vector.load %arg3[%c0_24, %c0_25] : memref<64x16xbf16, #tpu.memory_space<vmem>>, vector<64x16xbf16>
    %cst_26 = arith.constant dense<0.000000e+00> : vector<8x16xf32>
    %62 = tpu.matmul %60, %61, %cst_26 {dimension_numbers = #tpu.dot_dimension_numbers<[1], [0], [0], [1], [0, 0, 1, 1], [], []>} : vector<8x64xbf16>, vector<64x16xbf16>, vector<8x16xf32> -> vector<8x16xf32>
    %63 = vector.broadcast %59 : vector<1x16xf32> to vector<8x16xf32>
    %64 = arith.addf %62, %63 : vector<8x16xf32>
    %c0_27 = arith.constant 0 : index
    %c0_28 = arith.constant 0 : index
    %65 = vector.load %arg5[%c0_27, %c0_28] : memref<8x16xf32, #tpu.memory_space<vmem>>, vector<8x16xf32>
    tpu.vector_store %arg5[%c0_27, %c0_28], %64 {strides = array<i32>} : memref<8x16xf32, #tpu.memory_space<vmem>>, vector<8x16xf32>,
    return
  }
}

</mosaic_0001>

<llo_original>
// kernel: tpu_custom_call.1
$region0: #{tpu_custom_call.1}
  #allocation0 [shape = 'u32[]', space=smem, size = 0x4, offset = 0x4, fixed_abs, tag = 'smem constant byte address 0x4 - core index']
  #allocation1 [shape = 'u32[144,128]{1,0:T(1,128)}', space=vmem, size = 0x12000, scoped, tag = 'internal scratch']
  %s0 = inlined_call_operand.vmem [shape: f32[8,32], index: 0, kind: input, shape index: {}]
  %s1 = inlined_call_operand.hbm [shape: bf16[32,64], index: 1, kind: input, shape index: {}]
  %s2 = inlined_call_operand.vmem [shape: bf16[64,64], index: 2, kind: input, shape index: {}]
  %s3 = inlined_call_operand.vmem [shape: bf16[64,16], index: 3, kind: input, shape index: {}]
  %s4 = inlined_call_operand.vmem [shape: f32[1,640], index: 4, kind: input, shape index: {}]
  %s5 = inlined_call_operand.hbm [shape: f32[8,16], index: 5, kind: output, shape index: {}]
  %s6 = sld [smem:[#allocation0]]
  $region34: #{tpu_custom_call.1} parent=0
    _
  %s8 = ssub.s32 1, %s6
  %s9 = scalar_select 0, %s8, %s6
  $region1: #{tpu_custom_call.1} parent=0
    #allocation2 [shape = 'u8[8192]{0}', space=vmem, size = 0x2000, scoped, tag = 'input window, operand 1, single buffered']
    #allocation3 [shape = 's32[1]{0}', space=sflag, size = 0x4, scoped, tag = 'scoped memory for tpu_custom_call.1']
    #allocation4 [shape = 's32[1]{0}', space=sflag, size = 0x4, scoped, tag = 'scoped memory for tpu_custom_call.1']
    #allocation5 [shape = 'u8[4096]{0}', space=vmem, size = 0x1000, scoped, tag = 'output window, operand 0, single buffered']
    %10 = vsyncpa [#allocation3], 0
    %11 = vsyncpa [#allocation4], 0
    // Predicated region
    $region2: #{tpu_custom_call.1} parent=1 // pred_check
      _
    $region3: #{tpu_custom_call.1} parent=1 // pred_check_branch
      %13 = sbr.rel (0) target = $region5
    $region4: #{tpu_custom_call.1} parent=1 // pred_region
      _
    $region5: #{tpu_custom_call.1} parent=1 // pred_fallthru
      _
    // Predicated region
    $region6: #{tpu_custom_call.1} parent=1 // pred_check
      _
    $region7: #{tpu_custom_call.1} parent=1 // pred_check_branch
      %15 = sbr.rel (0) target = $region9
    $region8: #{tpu_custom_call.1} parent=1 // pred_region
      %s17 = ssub.s32 256, 256
      %18 = vsyncadd [#allocation3], %s17
      %s19 = sshll.u32 [#allocation2], 4
      %s20 = int_to_ptr.vmem [resolvable:$true] %s19
      %25 = dma.hbm_to_vmem [thread:$0]  %s1, 256, %s20, [#allocation3], 64, 64, 4
    $region9: #{tpu_custom_call.1} parent=1 // pred_fallthru
      _
    // Predicated region
    $region10: #{tpu_custom_call.1} parent=1 // pred_check
      _
    $region11: #{tpu_custom_call.1} parent=1 // pred_check_branch
      %27 = sbr.rel (0) target = $region13
    $region12: #{tpu_custom_call.1} parent=1 // pred_region
      _
    $region13: #{tpu_custom_call.1} parent=1 // pred_fallthru
      _
    // Predicated region
    $region14: #{tpu_custom_call.1} parent=1 // pred_check
      _
    $region15: #{tpu_custom_call.1} parent=1 // pred_check_branch
      %29 = sbr.rel (0) target = $region17
    $region16: #{tpu_custom_call.1} parent=1 // pred_region
      _
    $region17: #{tpu_custom_call.1} parent=1 // pred_fallthru
      _
    // Predicated region
    $region18: #{tpu_custom_call.1} parent=1 // pred_check
      _
    $region19: #{tpu_custom_call.1} parent=1 // pred_check_branch
      %31 = sbr.rel (0) target = $region21
    $region20: #{tpu_custom_call.1} parent=1 // pred_region
      _
    $region21: #{tpu_custom_call.1} parent=1 // pred_fallthru
      _
    // Predicated region
    $region22: #{tpu_custom_call.1} parent=1 // pred_check
      _
    $region23: #{tpu_custom_call.1} parent=1 // pred_check_branch
      %33 = sbr.rel (0) target = $region25
    $region24: #{tpu_custom_call.1} parent=1 // pred_region
      %34 = dma.done [#allocation3], 256
    $region25: #{tpu_custom_call.1} parent=1 // pred_fallthru
      _
    %v36 = vld [vmem:[%s0] sm:$0xff]
    %v37 = vpack.c.bf16 %v36, %v36
    %v38 = vld [vmem:[#allocation2] sm:$0xf]
    %v39 = vld [vmem:[#allocation2 + $0x4] sm:$0xf]
    %v40 = vld [vmem:[#allocation2 + $0x8] sm:$0xf]
    %v41 = vld [vmem:[#allocation2 + $0xc] sm:$0xf]
    %v46 = vunpack.c.l.b16 %v38
    %v47 = vunpack.c.l.b16 %v39
    %v48 = vunpack.c.l.b16 %v40
    %v49 = vunpack.c.l.b16 %v41
    %v50 = vpack.c.b16 %v47, %v46
    %v51 = vpack.c.b16 %v49, %v48
    %vm54 = vcmask 261120
    %v56 = vsel %vm54, %v37, 0
    %58 = vmatprep.subr.bf16.mxu0 0
    %59 = vmatpush1.bf16.msra.mxu0 %v50
    %60 = vmatprep.subr.bf16.mxu0 0
    %61 = vmatpush1.bf16.msra.mxu0 %v51
    %62 = vmatprep.subr.bf16.mxu0 0
    %63 = vmatpush1.bf16.msra.mxu0 0
    %64 = vmatprep.subr.bf16.mxu0 0
    %65 = vmatpush1.bf16.msra.mxu0 0
    %66 = vmatprep.subr.bf16.mxu0 0
    %67 = vmatpush1.bf16.msra.mxu0 0
    %68 = vmatprep.subr.bf16.mxu0 0
    %69 = vmatpush1.bf16.msra.mxu0 0
    %70 = vmatprep.subr.bf16.mxu0 0
    %71 = vmatpush1.bf16.msra.mxu0 0
    %72 = vmatprep.subr.bf16.mxu0 0
    %73 = vmatpush1.bf16.msra.mxu0 0
    %74 = vmatprep.subr.bf16.mxu0 0
    %75 = vmatpush1.bf16.msra.mxu0 0
    %76 = vmatprep.subr.bf16.mxu0 0
    %77 = vmatpush1.bf16.msra.mxu0 0
    %78 = vmatprep.subr.bf16.mxu0 0
    %79 = vmatpush1.bf16.msra.mxu0 0
    %80 = vmatprep.subr.bf16.mxu0 0
    %81 = vmatpush1.bf16.msra.mxu0 0
    %82 = vmatprep.subr.bf16.mxu0 0
    %83 = vmatpush1.bf16.msra.mxu0 0
    %84 = vmatprep.subr.bf16.mxu0 0
    %85 = vmatpush1.bf16.msra.mxu0 0
    %86 = vmatprep.subr.bf16.mxu0 0
    %87 = vmatpush1.bf16.msra.mxu0 0
    %88 = vmatprep.subr.bf16.mxu0 0
    %89 = vmatpush1.bf16.msra.mxu0 0
    %90 = vmatprep.mubr.bf16.mxu0 0
    %91 = vmatmul.mubr.bf16.gmra.mrb[0].mxu0 %v56
    %v92 = vpop.f32.mrb[0].mxu0
    %v93 = vadd.f32 0.0, %v92
    %v94 = vpop.f32.mrb[0].mxu0
    %v95 = vpop.f32.mrb[0].mxu0
    %v96 = vpop.f32.mrb[0].mxu0
    %97 = vdwg.mxu0
    %v98 = vld [vmem:[%s4] sm:$0x1]
    %v99 = vld [vmem:[%s4 + $0x1] sm:$0x1]
    %vm100 = vcmask 523264
    %v101 = vsel %vm100, %v93, 0.0
    %v102 = vrot.slane %v101, 4
    %v103 = vadd.f32 %v101, %v102
    %v104 = vrot.slane %v103, 2
    %v105 = vadd.f32 %v103, %v104
    %v106 = vrot.slane %v105, 1
    %v107 = vadd.f32 %v105, %v106
    %v108 = vrcp.pop 8.0
    %v109 = vmul.f32 %v107, %v108
    %v110 = vmul.f32 %v93, %v93
    %v111 = vsel %vm100, %v110, 0.0
    %v112 = vrot.slane %v111, 4
    %v113 = vadd.f32 %v111, %v112
    %v114 = vrot.slane %v113, 2
    %v115 = vadd.f32 %v113, %v114
    %v116 = vrot.slane %v115, 1
    %v117 = vadd.f32 %v115, %v116
    %v118 = vmul.f32 %v117, %v108
    %v119 = vmul.f32 %v109, %v109
    %v120 = vsub.f32 %v118, %v119
    %v121 = vadd.f32 %v120, 1e-05
    %v122 = vrsqrt.pop %v121
    %v123 = vmul.f32 %v122, %v98
    %v124 = vmul.f32 %v109, %v123
    %v125 = vsub.f32 %v99, %v124
    %v126 = vlaneseq
    %v127 = vshrl.u32 %v126, 7
    %v128 = vsub.s32 0, %v127
    %v129 = vrot.slane %v123, %v128
    %v130 = vmul.f32 %v93, %v129
    %v132 = vlaneseq
    %v133 = vshrl.u32 %v132, 7
    %v134 = vsub.s32 0, %v133
    %v135 = vrot.slane %v125, %v134
    %v137 = vadd.f32 %v130, %v135
    %v138 = vmul.f32 %v137, 0.2
    %v139 = vmax.f32 %v137, %v138
    %v140 = vpack.c.bf16 %v139, %v139
    %v141 = vld [vmem:[%s2] sm:$0xf]
    %v142 = vld [vmem:[%s2 + $0x4] sm:$0xf]
    %v143 = vld [vmem:[%s2 + $0x8] sm:$0xf]
    %v144 = vld [vmem:[%s2 + $0xc] sm:$0xf]
    %v145 = vld [vmem:[%s2 + $0x10] sm:$0xf]
    %v146 = vld [vmem:[%s2 + $0x14] sm:$0xf]
    %v147 = vld [vmem:[%s2 + $0x18] sm:$0xf]
    %v148 = vld [vmem:[%s2 + $0x1c] sm:$0xf]
    %v157 = vunpack.c.l.b16 %v141
    %v158 = vunpack.c.l.b16 %v142
    %v159 = vunpack.c.l.b16 %v143
    %v160 = vunpack.c.l.b16 %v144
    %v161 = vunpack.c.l.b16 %v145
    %v162 = vunpack.c.l.b16 %v146
    %v163 = vunpack.c.l.b16 %v147
    %v164 = vunpack.c.l.b16 %v148
    %v165 = vpack.c.b16 %v158, %v157
    %v166 = vpack.c.b16 %v160, %v159
    %v167 = vpack.c.b16 %v162, %v161
    %v168 = vpack.c.b16 %v164, %v163
    %v174 = vsel %vm100, %v140, 0
    %176 = vmatprep.subr.bf16.mxu0 0
    %177 = vmatpush1.bf16.msra.mxu0 %v165
    %178 = vmatprep.subr.bf16.mxu0 0
    %179 = vmatpush1.bf16.msra.mxu0 %v166
    %180 = vmatprep.subr.bf16.mxu0 0
    %181 = vmatpush1.bf16.msra.mxu0 %v167
    %182 = vmatprep.subr.bf16.mxu0 0
    %183 = vmatpush1.bf16.msra.mxu0 %v168
    %184 = vmatprep.subr.bf16.mxu0 0
    %185 = vmatpush1.bf16.msra.mxu0 0
    %186 = vmatprep.subr.bf16.mxu0 0
    %187 = vmatpush1.bf16.msra.mxu0 0
    %188 = vmatprep.subr.bf16.mxu0 0
    %189 = vmatpush1.bf16.msra.mxu0 0
    %190 = vmatprep.subr.bf16.mxu0 0
    %191 = vmatpush1.bf16.msra.mxu0 0
    %192 = vmatprep.subr.bf16.mxu0 0
    %193 = vmatpush1.bf16.msra.mxu0 0
    %194 = vmatprep.subr.bf16.mxu0 0
    %195 = vmatpush1.bf16.msra.mxu0 0
    %196 = vmatprep.subr.bf16.mxu0 0
    %197 = vmatpush1.bf16.msra.mxu0 0
    %198 = vmatprep.subr.bf16.mxu0 0
    %199 = vmatpush1.bf16.msra.mxu0 0
    %200 = vmatprep.subr.bf16.mxu0 0
    %201 = vmatpush1.bf16.msra.mxu0 0
    %202 = vmatprep.subr.bf16.mxu0 0
    %203 = vmatpush1.bf16.msra.mxu0 0
    %204 = vmatprep.subr.bf16.mxu0 0
    %205 = vmatpush1.bf16.msra.mxu0 0
    %206 = vmatprep.subr.bf16.mxu0 0
    %207 = vmatpush1.bf16.msra.mxu0 0
    %208 = vmatprep.mubr.bf16.mxu0 0
    %209 = vmatmul.mubr.bf16.gmra.mrb[0].mxu0 %v174
    %v210 = vpop.f32.mrb[0].mxu0
    %v211 = vadd.f32 0.0, %v210
    %v212 = vpop.f32.mrb[0].mxu0
    %v213 = vpop.f32.mrb[0].mxu0
    %v214 = vpop.f32.mrb[0].mxu0
    %215 = vdwg.mxu0
    %v216 = vld [vmem:[%s4 + $0x2] sm:$0x1]
    %v217 = vld [vmem:[%s4 + $0x3] sm:$0x1]
    %v218 = vsel %vm100, %v211, 0.0
    %v219 = vrot.slane %v218, 4
    %v220 = vadd.f32 %v218, %v219
    %v221 = vrot.slane %v220, 2
    %v222 = vadd.f32 %v220, %v221
    %v223 = vrot.slane %v222, 1
    %v224 = vadd.f32 %v222, %v223
    %v225 = vmul.f32 %v224, %v108
    %v226 = vmul.f32 %v211, %v211
    %v227 = vsel %vm100, %v226, 0.0
    %v228 = vrot.slane %v227, 4
    %v229 = vadd.f32 %v227, %v228
    %v230 = vrot.slane %v229, 2
    %v231 = vadd.f32 %v229, %v230
    %v232 = vrot.slane %v231, 1
    %v233 = vadd.f32 %v231, %v232
    %v234 = vmul.f32 %v233, %v108
    %v235 = vmul.f32 %v225, %v225
    %v236 = vsub.f32 %v234, %v235
    %v237 = vadd.f32 %v236, 1e-05
    %v238 = vrsqrt.pop %v237
    %v239 = vmul.f32 %v238, %v216
    %v240 = vmul.f32 %v225, %v239
    %v241 = vsub.f32 %v217, %v240
    %v242 = vlaneseq
    %v243 = vshrl.u32 %v242, 7
    %v244 = vsub.s32 0, %v243
    %v245 = vrot.slane %v239, %v244
    %v246 = vmul.f32 %v211, %v245
    %v248 = vlaneseq
    %v249 = vshrl.u32 %v248, 7
    %v250 = vsub.s32 0, %v249
    %v251 = vrot.slane %v241, %v250
    %v253 = vadd.f32 %v246, %v251
    %v254 = vmul.f32 %v253, 0.2
    %v255 = vmax.f32 %v253, %v254
    %v256 = vld [vmem:[%s4 + $0x4] sm:$0x1]
    %v257 = vpack.c.bf16 %v255, %v255
    %v258 = vld [vmem:[%s3] sm:$0xf]
    %v259 = vld [vmem:[%s3 + $0x4] sm:$0xf]
    %v260 = vld [vmem:[%s3 + $0x8] sm:$0xf]
    %v261 = vld [vmem:[%s3 + $0xc] sm:$0xf]
    %v262 = vld [vmem:[%s3 + $0x10] sm:$0xf]
    %v263 = vld [vmem:[%s3 + $0x14] sm:$0xf]
    %v264 = vld [vmem:[%s3 + $0x18] sm:$0xf]
    %v265 = vld [vmem:[%s3 + $0x1c] sm:$0xf]
    %v267 = vlaneseq
    %v268 = vshrl.u32 %v267, 7
    %v269 = vsub.s32 0, %v268
    %v270 = vrot.slane %v256, %v269
    %v280 = vunpack.c.l.b16 %v258
    %v281 = vunpack.c.l.b16 %v259
    %v282 = vunpack.c.l.b16 %v260
    %v283 = vunpack.c.l.b16 %v261
    %v284 = vunpack.c.l.b16 %v262
    %v285 = vunpack.c.l.b16 %v263
    %v286 = vunpack.c.l.b16 %v264
    %v287 = vunpack.c.l.b16 %v265
    %v288 = vpack.c.b16 %v281, %v280
    %v289 = vpack.c.b16 %v283, %v282
    %v290 = vpack.c.b16 %v285, %v284
    %v291 = vpack.c.b16 %v287, %v286
    %v297 = vsel %vm100, %v257, 0
    %299 = vmatprep.subr.bf16.mxu0 0
    %300 = vmatpush1.bf16.msra.mxu0 %v288
    %301 = vmatprep.subr.bf16.mxu0 0
    %302 = vmatpush1.bf16.msra.mxu0 %v289
    %303 = vmatprep.subr.bf16.mxu0 0
    %304 = vmatpush1.bf16.msra.mxu0 %v290
    %305 = vmatprep.subr.bf16.mxu0 0
    %306 = vmatpush1.bf16.msra.mxu0 %v291
    %307 = vmatprep.subr.bf16.mxu0 0
    %308 = vmatpush1.bf16.msra.mxu0 0
    %309 = vmatprep.subr.bf16.mxu0 0
    %310 = vmatpush1.bf16.msra.mxu0 0
    %311 = vmatprep.subr.bf16.mxu0 0
    %312 = vmatpush1.bf16.msra.mxu0 0
    %313 = vmatprep.subr.bf16.mxu0 0
    %314 = vmatpush1.bf16.msra.mxu0 0
    %315 = vmatprep.subr.bf16.mxu0 0
    %316 = vmatpush1.bf16.msra.mxu0 0
    %317 = vmatprep.subr.bf16.mxu0 0
    %318 = vmatpush1.bf16.msra.mxu0 0
    %319 = vmatprep.subr.bf16.mxu0 0
    %320 = vmatpush1.bf16.msra.mxu0 0
    %321 = vmatprep.subr.bf16.mxu0 0
    %322 = vmatpush1.bf16.msra.mxu0 0
    %323 = vmatprep.subr.bf16.mxu0 0
    %324 = vmatpush1.bf16.msra.mxu0 0
    %325 = vmatprep.subr.bf16.mxu0 0
    %326 = vmatpush1.bf16.msra.mxu0 0
    %327 = vmatprep.subr.bf16.mxu0 0
    %328 = vmatpush1.bf16.msra.mxu0 0
    %329 = vmatprep.subr.bf16.mxu0 0
    %330 = vmatpush1.bf16.msra.mxu0 0
    %331 = vmatprep.mubr.bf16.mxu0 0
    %332 = vmatmul.mubr.bf16.gmra.mrb[0].mxu0 %v297
    %v333 = vpop.f32.mrb[0].mxu0
    %v334 = vadd.f32 %v270, %v333
    %v335 = vpop.f32.mrb[0].mxu0
    %v336 = vpop.f32.mrb[0].mxu0
    %v337 = vpop.f32.mrb[0].mxu0
    %338 = vdwg.mxu0
    %vm339 = vcmask 130048
    %340 = vst.msk [vmem:[#allocation5] sm:$0xff] %vm339, %v334
    // Predicated region
    $region26: #{tpu_custom_call.1} parent=1 // pred_check
      _
    $region27: #{tpu_custom_call.1} parent=1 // pred_check_branch
      %342 = sbr.rel (0) target = $region29
    $region28: #{tpu_custom_call.1} parent=1 // pred_region
      %s344 = ssub.s32 128, 128
      %345 = vsyncadd [#allocation4], %s344
      %s347 = sshll.u32 [#allocation5], 4
      %s348 = int_to_ptr.vmem [resolvable:$true] %s347
      %350 = dma.vmem_to_hbm [thread:$0]  %s348, 128, %s5, [#allocation4]
    $region29: #{tpu_custom_call.1} parent=1 // pred_fallthru
      _
    // Predicated region
    $region30: #{tpu_custom_call.1} parent=1 // pred_check
      _
    $region31: #{tpu_custom_call.1} parent=1 // pred_check_branch
      %352 = sbr.rel (0) target = $region33
    $region32: #{tpu_custom_call.1} parent=1 // pred_region
      %353 = dma.done [#allocation4], 128
    $region33: #{tpu_custom_call.1} parent=1 // pred_fallthru
      _
    %354 = vsyncpa [#allocation3], 1
    %355 = vsyncpa [#allocation4], 1

</llo_original>
